<compile_context>
chip_gen: v7x
topology: tpu7x:2x2x1
jax: 0.10.0
libtpu: 0.0.40
codegen_flags: <defaults>
</compile_context>

<pallas_src>
import functools

import jax
import jax.numpy as jnp
import numpy as np
from jax.experimental import pallas as pl
from jax.experimental.pallas import tpu as pltpu


def _round_up(x, m):
    return ((x + m - 1) // m) * m


def _conv_block_kernel(*args, G, H, P, TOP, M_out, d, n_layers):
    """One grid step = one group of G batch samples, all conv layers fused.

    args layout:
      args[0]              x_ref    (G, H, W*C0)        input rows (compute dtype)
      args[1]              mask_ref (M_out, 1) f32      1 on sample rows, 0 on padding rows
      args[2+3l .. 4+3l]   t_ref    (3*W*Cl, W*Cl+1)    fused-ky block-Toeplitz weights
                           s_ref    (1, W*Cl+1) f32     folded BN scale (tiled over W)
                           b_ref    (1, W*Cl+1) f32     folded BN bias  (tiled over W)
      args[2+3n]           o_ref    (G, H, W*Cn) f32
      args[3+3n ..]        buf_l    (R_buf, W*Cl)       padded, stacked activations (VMEM)
    """
    x_ref = args[0]
    mask_ref = args[1]
    o_ref = args[2 + 3 * n_layers]
    bufs = args[3 + 3 * n_layers: 3 + 4 * n_layers]
    R_buf = bufs[0].shape[0]

    def _zero(buf, r0, r1):
        if r1 > r0:
            buf[r0:r1, :] = jnp.zeros((r1 - r0, buf.shape[-1]), buf.dtype)

    # Zero the halo rows that are never written below.  Re-done every grid step
    # (a few aligned 8-row stores) so correctness does not depend on
    # program_id(0) == 0 running on every TensorCore under "parallel" splitting.
    for l in range(n_layers):
        _zero(bufs[l], 0, TOP)
        if l == 0:
            for g in range(G - 1):
                _zero(bufs[0], TOP + g * P + H, TOP + (g + 1) * P)
            _zero(bufs[0], TOP + (G - 1) * P + H, R_buf)
        else:
            _zero(bufs[l], TOP + M_out, R_buf)

    # Scatter the G samples into the stacked, padded buffer (8-aligned stores;
    # the P - H >= d zero rows between slots double as both samples' halos).
    for g in range(G):
        bufs[0][TOP + g * P: TOP + g * P + H, :] = x_ref[g]

    y = None
    for l in range(n_layers):
        t_ref = args[2 + 3 * l]
        s_ref = args[3 + 3 * l]
        b_ref = args[4 + 3 * l]
        buf = bufs[l]

        # Fused-ky contraction: one (M_out, 3*W*Cin) @ (3*W*Cin, W*Cout) MXU
        # matmul per layer (bf16 in, f32 accumulate).
        lhs = jnp.concatenate(
            [buf[TOP - d: TOP - d + M_out, :],
             buf[TOP: TOP + M_out, :],
             buf[TOP + d: TOP + d + M_out, :]],
            axis=-1)
        acc = jnp.dot(lhs, t_ref[...], preferred_element_type=jnp.float32)

        # Fused BatchNorm(eval) affine + ReLU, lane-dense (M_out, W*Cout), f32.
        y = jnp.maximum(acc * s_ref[...] + b_ref[...], 0.0)

        if l + 1 < n_layers:
            # Zero inter-sample padding rows (they act as the next layer's conv
            # zero-padding) and hand off with ONE aligned full-width store.
            y = y * mask_ref[...]
            bufs[l + 1][TOP: TOP + M_out, :] = y.astype(bufs[l + 1].dtype)

    # Gather valid rows straight to the output block (8-aligned slices).
    for g in range(G):
        o_ref[g] = y[g * P: g * P + H, :].astype(o_ref.dtype)


def _make_row_toeplitz(w_hwio, W, d, dtype):
    """Fold kx taps, input channels and w-direction zero padding of a dilated
    3x3 conv into ky-stacked block-Toeplitz weights of shape (3*W*Cin, W*Cout):

      T[ky*W*Cin + wi*Cin + ci, wo*Cout + co] = w[ky, kx, ci, co]
        whenever wi == wo + (kx - 1) * d lies inside [0, W).
    """
    Cin, Cout = int(w_hwio.shape[2]), int(w_hwio.shape[3])
    w = np.asarray(w_hwio, dtype=np.float32)
    T = np.zeros((3, W * Cin, W * Cout), np.float32)
    for ky in range(3):
        for kx in range(3):
            for wo in range(W):
                wi = wo + (kx - 1) * d
                if 0 <= wi < W:
                    T[ky, wi * Cin:(wi + 1) * Cin,
                      wo * Cout:(wo + 1) * Cout] = w[ky, kx]
    return jnp.asarray(T.reshape(3 * W * Cin, W * Cout), dtype=dtype)


def conv_block_pallas(x_nchw, params, dilation, *,
                      compute_dtype=jnp.bfloat16, target_rows=256):
    """ConvBlock forward. Input NCHW (PyTorch convention), output NCHW f32.

    target_rows: approximate MXU M per grid step (use ~128 on v5e, ~256 on
    v6e/v7x).
    """
    N, Cin, H, W = map(int, x_nchw.shape)
    d = int(dilation)
    n_layers = len(params)
    for (w_hwio, _, _) in params:
        assert int(w_hwio.shape[0]) == 3 and int(w_hwio.shape[1]) == 3, "3x3 only"

    # --- row geometry --------------------------------------------------------
    # Each sample occupies H rows inside a per-sample pitch P (multiple of 8 so
    # every sample slot starts 8-aligned); the P-H >= d zero rows between slots
    # serve as the bottom halo of sample g AND the top halo of sample g+1.
    TOP = _round_up(d, 8)                   # zero rows above sample 0
    P = _round_up(H + d, 8)                 # per-sample pitch
    G = max(1, min(N, target_rows // P))    # samples stacked per grid step
    n_groups = -(-N // G)
    N_pad = n_groups * G
    M_out = _round_up((G - 1) * P + H, 8)   # matmul M (sample + gap rows)
    R_buf = TOP + M_out + _round_up(d, 8)   # padded/stacked buffer rows
    # TODO(synk): for large H add an H-tile grid axis (2*d-row halo) and for
    # large W a W-tile axis so the O(W^2) block-Toeplitz weights and per-step
    # tiles stay within v7x's 64 MiB VMEM and the pipeline gets >=4 steps/core.

    # Row-validity mask over the M_out matmul rows (1 on sample rows, 0 on
    # inter-sample / tail padding rows), built statically in the wrapper.
    rows = np.arange(M_out)
    valid = ((rows % P) < H) & (rows < (G - 1) * P + H)
    mask = jnp.asarray(valid.astype(np.float32).reshape(M_out, 1))

    # NCHW -> lane-dense rows (N_pad, H, W*Cin) in the compute dtype.
    x_rows = jnp.transpose(x_nchw, (0, 2, 3, 1)).reshape(N, H, W * Cin)
    x_rows = x_rows.astype(compute_dtype)
    if N_pad != N:
        x_rows = jnp.pad(x_rows, ((0, N_pad - N), (0, 0), (0, 0)))

    chans = [Cin] + [int(p[0].shape[-1]) for p in params]
    inputs = [x_rows, mask]
    in_specs = [
        pl.BlockSpec((G, H, W * Cin), lambda i: (i, 0, 0)),
        pl.BlockSpec((M_out, 1), lambda i: (0, 0)),
    ]
    scratch_shapes = []
    for li, (w_hwio, scale, bias) in enumerate(params):
        c_in, c_out = chans[li], chans[li + 1]
        T = _make_row_toeplitz(w_hwio, W, d, compute_dtype)  # (3*W*c_in, W*c_out)
        s_t = jnp.tile(scale, W).reshape(1, W * c_out).astype(jnp.float32)
        b_t = jnp.tile(bias, W).reshape(1, W * c_out).astype(jnp.float32)
        inputs += [T, s_t, b_t]
        in_specs += [
            pl.BlockSpec((3 * W * c_in, W * c_out), lambda i: (0, 0)),
            pl.BlockSpec((1, W * c_out), lambda i: (0, 0)),
            pl.BlockSpec((1, W * c_out), lambda i: (0, 0)),
        ]
        scratch_shapes.append(pltpu.VMEM((R_buf, W * c_in), compute_dtype))

    kernel = functools.partial(_conv_block_kernel, G=G, H=H, P=P, TOP=TOP,
                               M_out=M_out, d=d, n_layers=n_layers)
    out_rows = pl.pallas_call(
        kernel,
        out_shape=jax.ShapeDtypeStruct((N_pad, H, W * chans[-1]), jnp.float32),
        grid=(n_groups,),
        in_specs=in_specs,
        out_specs=pl.BlockSpec((G, H, W * chans[-1]), lambda i: (i, 0, 0)),
        scratch_shapes=scratch_shapes,
        compiler_params=pltpu.CompilerParams(
            dimension_semantics=("parallel",)),
    )(*inputs)

    out_rows = out_rows[:N]
    # (N, H, W*Cout) -> NCHW
    return jnp.transpose(out_rows.reshape(N, H, W, chans[-1]), (0, 3, 1, 2))


def make_conv_layer_params(key, in_channels, out_channels):
    """Deterministic Conv2d + BatchNorm2d parameters (PyTorch shapes)."""
    k_w, k_b, k_g, k_beta, k_rm, k_rv = jax.random.split(key, 6)
    fan_in = in_channels * 9
    bound = 1.0 / np.sqrt(fan_in)
    w_oihw = jax.random.uniform(k_w, (out_channels, in_channels, 3, 3),
                                jnp.float32, -bound, bound)
    conv_b = jax.random.uniform(k_b, (out_channels,), jnp.float32, -bound, bound)
    gamma = 1.0 + 0.1 * jax.random.normal(k_g, (out_channels,), jnp.float32)
    beta = 0.1 * jax.random.normal(k_beta, (out_channels,), jnp.float32)
    run_mean = 0.1 * jax.random.normal(k_rm, (out_channels,), jnp.float32)
    run_var = jnp.abs(1.0 + 0.1 * jax.random.normal(k_rv, (out_channels,), jnp.float32))
    eps = 1e-5
    # Fold BN (eval) and conv bias into one affine: y = conv(x)*scale + bias.
    scale = gamma / jnp.sqrt(run_var + eps)
    bias = (conv_b - run_mean) * scale + beta
    # NCHW weight (O, I, kh, kw) -> HWIO for the NHWC-style kernel/reference.
    w_hwio = jnp.transpose(w_oihw, (2, 3, 1, 0))
    return w_hwio, scale, bias


def _ref_conv_layer(x_nhwc, w_hwio, scale, bias, d):
    y = jax.lax.conv_general_dilated(
        x_nhwc, w_hwio, window_strides=(1, 1),
        padding=((d, d), (d, d)), rhs_dilation=(d, d),
        dimension_numbers=("NHWC", "HWIO", "NHWC"))
    return jnp.maximum(y * scale + bias, 0.0)


def _ref_conv_block(x_nchw, params, d):
    x = jnp.transpose(x_nchw, (0, 2, 3, 1))
    for (w_hwio, scale, bias) in params:
        x = _ref_conv_layer(x, w_hwio, scale, bias, d)
    return jnp.transpose(x, (0, 3, 1, 2))


if __name__ == "__main__":
    # ConvBlock(in_channels=4, out_channels=8, nconv=2, dilation=2)
    N, Cin, Cout, H, W = 2, 4, 8, 16, 16
    nconv, dilation = 2, 2

    key = jax.random.PRNGKey(0)
    kx, k1, k2 = jax.random.split(key, 3)
    x = jax.random.normal(kx, (N, Cin, H, W), jnp.float32)

    # Due to the repeated 'conv2d' module name, nconv>=2 means exactly 2 layers.
    n_layers = 1 if nconv == 1 else 2
    params = [make_conv_layer_params(k1, Cin, Cout)]
    if n_layers == 2:
        params.append(make_conv_layer_params(k2, Cout, Cout))

    ref = _ref_conv_block(x, params, dilation)

    # f32 path: tight check of the Toeplitz / padding / stacking / affine math.
    out_f32 = jax.block_until_ready(
        conv_block_pallas(x, params, dilation, compute_dtype=jnp.float32))
    np.testing.assert_allclose(np.asarray(out_f32), np.asarray(ref),
                               rtol=1e-5, atol=1e-4)

    # bf16 path (default fast path for v6e/v7x): looser tolerances.
    out_bf16 = jax.block_until_ready(conv_block_pallas(x, params, dilation))
    np.testing.assert_allclose(np.asarray(out_bf16), np.asarray(ref),
                               rtol=2e-2, atol=5e-2)

    print("KERNEL_OK")
</pallas_src>

<mosaic_0001>
module attributes {stable_mosaic.version = 11 : i64} {
  func.func @_conv_block_kernel(%arg0: i32, %arg1: memref<2x16x64xf32, #tpu.memory_space<vmem>>, %arg2: memref<40x1xf32, #tpu.memory_space<vmem>>, %arg3: memref<192x128xf32, #tpu.memory_space<vmem>>, %arg4: memref<1x128xf32, #tpu.memory_space<vmem>>, %arg5: memref<1x128xf32, #tpu.memory_space<vmem>>, %arg6: memref<384x128xf32, #tpu.memory_space<vmem>>, %arg7: memref<1x128xf32, #tpu.memory_space<vmem>>, %arg8: memref<1x128xf32, #tpu.memory_space<vmem>>, %arg9: memref<2x16x128xf32, #tpu.memory_space<vmem>>, %arg10: memref<56x64xf32, #tpu.memory_space<vmem>>, %arg11: memref<56x128xf32, #tpu.memory_space<vmem>>) attributes {dimension_semantics = [#tpu.dimension_semantics<parallel>], iteration_bounds = array<i64: 1>, scalar_prefetch = 0 : i64, scratch_operands = 2 : i64, tpu.core_type = #tpu.core_type<tc>, window_params = [{transform_indices = @transform_0, window_bounds = array<i64: 2, 16, 64>}, {pipeline_mode = #tpu.pipeline_mode<synchronous>, transform_indices = @transform_1, window_bounds = array<i64: 40, 1>}, {pipeline_mode = #tpu.pipeline_mode<synchronous>, transform_indices = @transform_2, window_bounds = array<i64: 192, 128>}, {pipeline_mode = #tpu.pipeline_mode<synchronous>, transform_indices = @transform_3, window_bounds = array<i64: 1, 128>}, {pipeline_mode = #tpu.pipeline_mode<synchronous>, transform_indices = @transform_4, window_bounds = array<i64: 1, 128>}, {pipeline_mode = #tpu.pipeline_mode<synchronous>, transform_indices = @transform_5, window_bounds = array<i64: 384, 128>}, {pipeline_mode = #tpu.pipeline_mode<synchronous>, transform_indices = @transform_6, window_bounds = array<i64: 1, 128>}, {pipeline_mode = #tpu.pipeline_mode<synchronous>, transform_indices = @transform_7, window_bounds = array<i64: 1, 128>}, {transform_indices = @transform_8, window_bounds = array<i64: 2, 16, 128>}]} {
    %cst = arith.constant 0.000000e+00 : f32
    %0 = vector.broadcast %cst : f32 to vector<8x64xf32>
    %c0 = arith.constant 0 : index
    %c0_0 = arith.constant 0 : index
    %1 = vector.load %arg10[%c0, %c0_0] : memref<56x64xf32, #tpu.memory_space<vmem>>, vector<8x64xf32>
    tpu.vector_store %arg10[%c0, %c0_0], %0 {strides = array<i32>} : memref<56x64xf32, #tpu.memory_space<vmem>>, vector<8x64xf32>,
    %cst_1 = arith.constant 0.000000e+00 : f32
    %2 = vector.broadcast %cst_1 : f32 to vector<8x64xf32>
    %c24 = arith.constant 24 : index
    %c0_2 = arith.constant 0 : index
    %3 = vector.load %arg10[%c24, %c0_2] : memref<56x64xf32, #tpu.memory_space<vmem>>, vector<8x64xf32>
    tpu.vector_store %arg10[%c24, %c0_2], %2 {strides = array<i32>} : memref<56x64xf32, #tpu.memory_space<vmem>>, vector<8x64xf32>,
    %cst_3 = arith.constant 0.000000e+00 : f32
    %4 = vector.broadcast %cst_3 : f32 to vector<8x64xf32>
    %c48 = arith.constant 48 : index
    %c0_4 = arith.constant 0 : index
    %5 = vector.load %arg10[%c48, %c0_4] : memref<56x64xf32, #tpu.memory_space<vmem>>, vector<8x64xf32>
    tpu.vector_store %arg10[%c48, %c0_4], %4 {strides = array<i32>} : memref<56x64xf32, #tpu.memory_space<vmem>>, vector<8x64xf32>,
    %cst_5 = arith.constant 0.000000e+00 : f32
    %6 = vector.broadcast %cst_5 : f32 to vector<8x128xf32>
    %c0_6 = arith.constant 0 : index
    %c0_7 = arith.constant 0 : index
    %7 = vector.load %arg11[%c0_6, %c0_7] : memref<56x128xf32, #tpu.memory_space<vmem>>, vector<8x128xf32>
    tpu.vector_store %arg11[%c0_6, %c0_7], %6 {strides = array<i32>} : memref<56x128xf32, #tpu.memory_space<vmem>>, vector<8x128xf32>,
    %cst_8 = arith.constant 0.000000e+00 : f32
    %8 = vector.broadcast %cst_8 : f32 to vector<8x128xf32>
    %c48_9 = arith.constant 48 : index
    %c0_10 = arith.constant 0 : index
    %9 = vector.load %arg11[%c48_9, %c0_10] : memref<56x128xf32, #tpu.memory_space<vmem>>, vector<8x128xf32>
    tpu.vector_store %arg11[%c48_9, %c0_10], %8 {strides = array<i32>} : memref<56x128xf32, #tpu.memory_space<vmem>>, vector<8x128xf32>,
    %c0_11 = arith.constant 0 : index
    %c0_12 = arith.constant 0 : index
    %c0_13 = arith.constant 0 : index
    %10 = vector.load %arg1[%c0_11, %c0_12, %c0_13] : memref<2x16x64xf32, #tpu.memory_space<vmem>>, vector<1x16x64xf32>
    %11 = vector.shape_cast %10 : vector<1x16x64xf32> to vector<16x64xf32>
    %c8 = arith.constant 8 : index
    %c0_14 = arith.constant 0 : index
    %12 = vector.load %arg10[%c8, %c0_14] : memref<56x64xf32, #tpu.memory_space<vmem>>, vector<16x64xf32>
    tpu.vector_store %arg10[%c8, %c0_14], %11 {strides = array<i32>} : memref<56x64xf32, #tpu.memory_space<vmem>>, vector<16x64xf32>,
    %c1 = arith.constant 1 : index
    %c0_15 = arith.constant 0 : index
    %c0_16 = arith.constant 0 : index
    %13 = vector.load %arg1[%c1, %c0_15, %c0_16] : memref<2x16x64xf32, #tpu.memory_space<vmem>>, vector<1x16x64xf32>
    %14 = vector.shape_cast %13 : vector<1x16x64xf32> to vector<16x64xf32>
    %c32 = arith.constant 32 : index
    %c0_17 = arith.constant 0 : index
    %15 = vector.load %arg10[%c32, %c0_17] : memref<56x64xf32, #tpu.memory_space<vmem>>, vector<16x64xf32>
    tpu.vector_store %arg10[%c32, %c0_17], %14 {strides = array<i32>} : memref<56x64xf32, #tpu.memory_space<vmem>>, vector<16x64xf32>,
    %c6 = arith.constant 6 : index
    %c0_18 = arith.constant 0 : index
    %16 = vector.load %arg10[%c6, %c0_18] : memref<56x64xf32, #tpu.memory_space<vmem>>, vector<40x64xf32>
    %c8_19 = arith.constant 8 : index
    %c0_20 = arith.constant 0 : index
    %17 = vector.load %arg10[%c8_19, %c0_20] : memref<56x64xf32, #tpu.memory_space<vmem>>, vector<40x64xf32>
    %c10 = arith.constant 10 : index
    %c0_21 = arith.constant 0 : index
    %18 = vector.load %arg10[%c10, %c0_21] : memref<56x64xf32, #tpu.memory_space<vmem>>, vector<40x64xf32>
    %19 = tpu.concatenate %16, %17, %18 in 1 : vector<40x64xf32>, vector<40x64xf32>, vector<40x64xf32> -> vector<40x192xf32>
    %c0_22 = arith.constant 0 : index
    %c0_23 = arith.constant 0 : index
    %20 = vector.load %arg3[%c0_22, %c0_23] : memref<192x128xf32, #tpu.memory_space<vmem>>, vector<192x128xf32>
    %cst_24 = arith.constant dense<0.000000e+00> : vector<40x128xf32>
    %21 = tpu.matmul %19, %20, %cst_24 {dimension_numbers = #tpu.dot_dimension_numbers<[1], [0], [0], [1], [0, 0, 1, 1], [], []>} : vector<40x192xf32>, vector<192x128xf32>, vector<40x128xf32> -> vector<40x128xf32>
    %c0_25 = arith.constant 0 : index
    %c0_26 = arith.constant 0 : index
    %22 = vector.load %arg4[%c0_25, %c0_26] : memref<1x128xf32, #tpu.memory_space<vmem>>, vector<1x128xf32>
    %23 = vector.broadcast %22 : vector<1x128xf32> to vector<40x128xf32>
    %24 = arith.mulf %21, %23 : vector<40x128xf32>
    %c0_27 = arith.constant 0 : index
    %c0_28 = arith.constant 0 : index
    %25 = vector.load %arg5[%c0_27, %c0_28] : memref<1x128xf32, #tpu.memory_space<vmem>>, vector<1x128xf32>
    %26 = vector.broadcast %25 : vector<1x128xf32> to vector<40x128xf32>
    %27 = arith.addf %24, %26 : vector<40x128xf32>
    %cst_29 = arith.constant 0.000000e+00 : f32
    %28 = vector.broadcast %cst_29 : f32 to vector<40x128xf32>
    %29 = arith.maximumf %27, %28 : vector<40x128xf32>
    %c0_30 = arith.constant 0 : index
    %c0_31 = arith.constant 0 : index
    %30 = vector.load %arg2[%c0_30, %c0_31] : memref<40x1xf32, #tpu.memory_space<vmem>>, vector<40x1xf32>
    %31 = vector.broadcast %30 : vector<40x1xf32> to vector<40x128xf32>
    %32 = arith.mulf %29, %31 : vector<40x128xf32>
    %c8_32 = arith.constant 8 : index
    %c0_33 = arith.constant 0 : index
    %33 = vector.load %arg11[%c8_32, %c0_33] : memref<56x128xf32, #tpu.memory_space<vmem>>, vector<40x128xf32>
    tpu.vector_store %arg11[%c8_32, %c0_33], %32 {strides = array<i32>} : memref<56x128xf32, #tpu.memory_space<vmem>>, vector<40x128xf32>,
    %c6_34 = arith.constant 6 : index
    %c0_35 = arith.constant 0 : index
    %34 = vector.load %arg11[%c6_34, %c0_35] : memref<56x128xf32, #tpu.memory_space<vmem>>, vector<40x128xf32>
    %c8_36 = arith.constant 8 : index
    %c0_37 = arith.constant 0 : index
    %35 = vector.load %arg11[%c8_36, %c0_37] : memref<56x128xf32, #tpu.memory_space<vmem>>, vector<40x128xf32>
    %c10_38 = arith.constant 10 : index
    %c0_39 = arith.constant 0 : index
    %36 = vector.load %arg11[%c10_38, %c0_39] : memref<56x128xf32, #tpu.memory_space<vmem>>, vector<40x128xf32>
    %37 = tpu.concatenate %34, %35, %36 in 1 : vector<40x128xf32>, vector<40x128xf32>, vector<40x128xf32> -> vector<40x384xf32>
    %c0_40 = arith.constant 0 : index
    %c0_41 = arith.constant 0 : index
    %38 = vector.load %arg6[%c0_40, %c0_41] : memref<384x128xf32, #tpu.memory_space<vmem>>, vector<384x128xf32>
    %cst_42 = arith.constant dense<0.000000e+00> : vector<40x128xf32>
    %39 = tpu.matmul %37, %38, %cst_42 {dimension_numbers = #tpu.dot_dimension_numbers<[1], [0], [0], [1], [0, 0, 1, 1], [], []>} : vector<40x384xf32>, vector<384x128xf32>, vector<40x128xf32> -> vector<40x128xf32>
    %c0_43 = arith.constant 0 : index
    %c0_44 = arith.constant 0 : index
    %40 = vector.load %arg7[%c0_43, %c0_44] : memref<1x128xf32, #tpu.memory_space<vmem>>, vector<1x128xf32>
    %41 = vector.broadcast %40 : vector<1x128xf32> to vector<40x128xf32>
    %42 = arith.mulf %39, %41 : vector<40x128xf32>
    %c0_45 = arith.constant 0 : index
    %c0_46 = arith.constant 0 : index
    %43 = vector.load %arg8[%c0_45, %c0_46] : memref<1x128xf32, #tpu.memory_space<vmem>>, vector<1x128xf32>
    %44 = vector.broadcast %43 : vector<1x128xf32> to vector<40x128xf32>
    %45 = arith.addf %42, %44 : vector<40x128xf32>
    %cst_47 = arith.constant 0.000000e+00 : f32
    %46 = vector.broadcast %cst_47 : f32 to vector<40x128xf32>
    %47 = arith.maximumf %45, %46 : vector<40x128xf32>
    %48 = vector.extract_strided_slice %47 {offsets = [0, 0], sizes = [16, 128], strides = [1, 1]} : vector<40x128xf32> to vector<16x128xf32>
    %c0_48 = arith.constant 0 : index
    %c0_49 = arith.constant 0 : index
    %c0_50 = arith.constant 0 : index
    %49 = vector.load %arg9[%c0_48, %c0_49, %c0_50] : memref<2x16x128xf32, #tpu.memory_space<vmem>>, vector<1x16x128xf32>
    %50 = vector.shape_cast %49 : vector<1x16x128xf32> to vector<16x128xf32>
    %51 = vector.shape_cast %48 : vector<16x128xf32> to vector<1x16x128xf32>
    tpu.vector_store %arg9[%c0_48, %c0_49, %c0_50], %51 {strides = array<i32>} : memref<2x16x128xf32, #tpu.memory_space<vmem>>, vector<1x16x128xf32>,
    %52 = vector.extract_strided_slice %47 {offsets = [24, 0], sizes = [16, 128], strides = [1, 1]} : vector<40x128xf32> to vector<16x128xf32>
    %c1_51 = arith.constant 1 : index
    %c0_52 = arith.constant 0 : index
    %c0_53 = arith.constant 0 : index
    %53 = vector.load %arg9[%c1_51, %c0_52, %c0_53] : memref<2x16x128xf32, #tpu.memory_space<vmem>>, vector<1x16x128xf32>
    %54 = vector.shape_cast %53 : vector<1x16x128xf32> to vector<16x128xf32>
    %55 = vector.shape_cast %52 : vector<16x128xf32> to vector<1x16x128xf32>
    tpu.vector_store %arg9[%c1_51, %c0_52, %c0_53], %55 {strides = array<i32>} : memref<2x16x128xf32, #tpu.memory_space<vmem>>, vector<1x16x128xf32>,
    return
  }
  func.func @transform_0(%arg0: i32) -> (i32, i32, i32) {
    %c0_i32 = arith.constant 0 : i32
    %c0_i32_0 = arith.constant 0 : i32
    %c0_i32_1 = arith.constant 0 : i32
    return %arg0, %c0_i32, %c0_i32_0 : i32, i32, i32
  }
  func.func @transform_1(%arg0: i32) -> (i32, i32) {
    %c0_i32 = arith.constant 0 : i32
    %c0_i32_0 = arith.constant 0 : i32
    %c0_i32_1 = arith.constant 0 : i32
    return %c0_i32, %c0_i32_0 : i32, i32
  }
  func.func @transform_2(%arg0: i32) -> (i32, i32) {
    %c0_i32 = arith.constant 0 : i32
    %c0_i32_0 = arith.constant 0 : i32
    %c0_i32_1 = arith.constant 0 : i32
    return %c0_i32, %c0_i32_0 : i32, i32
  }
  func.func @transform_3(%arg0: i32) -> (i32, i32) {
    %c0_i32 = arith.constant 0 : i32
    %c0_i32_0 = arith.constant 0 : i32
    %c0_i32_1 = arith.constant 0 : i32
    return %c0_i32, %c0_i32_0 : i32, i32
  }
  func.func @transform_4(%arg0: i32) -> (i32, i32) {
    %c0_i32 = arith.constant 0 : i32
    %c0_i32_0 = arith.constant 0 : i32
    %c0_i32_1 = arith.constant 0 : i32
    return %c0_i32, %c0_i32_0 : i32, i32
  }
  func.func @transform_5(%arg0: i32) -> (i32, i32) {
    %c0_i32 = arith.constant 0 : i32
    %c0_i32_0 = arith.constant 0 : i32
    %c0_i32_1 = arith.constant 0 : i32
    return %c0_i32, %c0_i32_0 : i32, i32
  }
  func.func @transform_6(%arg0: i32) -> (i32, i32) {
    %c0_i32 = arith.constant 0 : i32
    %c0_i32_0 = arith.constant 0 : i32
    %c0_i32_1 = arith.constant 0 : i32
    return %c0_i32, %c0_i32_0 : i32, i32
  }
  func.func @transform_7(%arg0: i32) -> (i32, i32) {
    %c0_i32 = arith.constant 0 : i32
    %c0_i32_0 = arith.constant 0 : i32
    %c0_i32_1 = arith.constant 0 : i32
    return %c0_i32, %c0_i32_0 : i32, i32
  }
  func.func @transform_8(%arg0: i32) -> (i32, i32, i32) {
    %c0_i32 = arith.constant 0 : i32
    %c0_i32_0 = arith.constant 0 : i32
    %c0_i32_1 = arith.constant 0 : i32
    return %arg0, %c0_i32, %c0_i32_0 : i32, i32, i32
  }
}

</mosaic_0001>

<llo_original>
// kernel: tpu_custom_call.1
$region0: #{tpu_custom_call.1}
  #allocation0 [shape = 'u32[]', space=smem, size = 0x4, offset = 0x4, fixed_abs, tag = 'smem constant byte address 0x4 - core index']
  #allocation1 [shape = 'u32[144,128]{1,0:T(1,128)}', space=vmem, size = 0x12000, scoped, tag = 'internal scratch']
  #allocation2 [shape = 'f32[56,64]{1,0:T(8,128)}', space=vmem, size = 0x7000, scoped, tag = 'scratch operand']
  #allocation3 [shape = 'f32[56,128]{1,0:T(8,128)}', space=vmem, size = 0x7000, scoped, tag = 'scratch operand']
  %s0 = inlined_call_operand.vmem [shape: f32[2,16,64], index: 0, kind: input, shape index: {}]
  %s1 = inlined_call_operand.vmem [shape: f32[40,1], index: 1, kind: input, shape index: {}]
  %s2 = inlined_call_operand.hbm [shape: f32[192,128], index: 2, kind: input, shape index: {}]
  %s3 = inlined_call_operand.vmem [shape: f32[1,128], index: 3, kind: input, shape index: {}]
  %s4 = inlined_call_operand.vmem [shape: f32[1,128], index: 4, kind: input, shape index: {}]
  %s5 = inlined_call_operand.hbm [shape: f32[384,128], index: 5, kind: input, shape index: {}]
  %s6 = inlined_call_operand.vmem [shape: f32[1,128], index: 6, kind: input, shape index: {}]
  %s7 = inlined_call_operand.vmem [shape: f32[1,128], index: 7, kind: input, shape index: {}]
  %s8 = inlined_call_operand.hbm [shape: f32[2,16,128], index: 8, kind: output, shape index: {}]
  %s9 = sld [smem:[#allocation0]]
  $region50: #{tpu_custom_call.1} parent=0
    _
  %s11 = ssub.s32 1, %s9
  %s12 = scalar_select 0, %s11, %s9
  $region1: #{tpu_custom_call.1} parent=0
    #allocation4 [shape = 'u8[98304]{0}', space=vmem, size = 0x18000, scoped, tag = 'input window, operand 2, single buffered']
    #allocation5 [shape = 's32[1]{0}', space=sflag, size = 0x4, scoped, tag = 'scoped memory for tpu_custom_call.1']
    #allocation6 [shape = 's32[1]{0}', space=sflag, size = 0x4, scoped, tag = 'scoped memory for tpu_custom_call.1']
    #allocation7 [shape = 'u8[196608]{0}', space=vmem, size = 0x30000, scoped, tag = 'input window, operand 5, single buffered']
    #allocation8 [shape = 's32[1]{0}', space=sflag, size = 0x4, scoped, tag = 'scoped memory for tpu_custom_call.1']
    #allocation9 [shape = 'u8[16384]{0}', space=vmem, size = 0x4000, scoped, tag = 'output window, operand 0, single buffered']
    %13 = vsyncpa [#allocation5], 0
    %14 = vsyncpa [#allocation8], 0
    %15 = vsyncpa [#allocation6], 0
    // Predicated region
    $region2: #{tpu_custom_call.1} parent=1 // pred_check
      _
    $region3: #{tpu_custom_call.1} parent=1 // pred_check_branch
      %17 = sbr.rel (0) target = $region5
    $region4: #{tpu_custom_call.1} parent=1 // pred_region
      _
    $region5: #{tpu_custom_call.1} parent=1 // pred_fallthru
      _
    // Predicated region
    $region6: #{tpu_custom_call.1} parent=1 // pred_check
      _
    $region7: #{tpu_custom_call.1} parent=1 // pred_check_branch
      %19 = sbr.rel (0) target = $region9
    $region8: #{tpu_custom_call.1} parent=1 // pred_region
      _
    $region9: #{tpu_custom_call.1} parent=1 // pred_fallthru
      _
    // Predicated region
    $region10: #{tpu_custom_call.1} parent=1 // pred_check
      _
    $region11: #{tpu_custom_call.1} parent=1 // pred_check_branch
      %21 = sbr.rel (0) target = $region13
    $region12: #{tpu_custom_call.1} parent=1 // pred_region
      %s23 = ssub.s32 3072, 3072
      %24 = vsyncadd [#allocation5], %s23
      %s25 = sshll.u32 [#allocation4], 4
      %s26 = int_to_ptr.vmem [resolvable:$true] %s25
      %31 = dma.hbm_to_vmem [thread:$0]  %s2, 3072, %s26, [#allocation5], 128, 128, 8
    $region13: #{tpu_custom_call.1} parent=1 // pred_fallthru
      _
    // Predicated region
    $region14: #{tpu_custom_call.1} parent=1 // pred_check
      _
    $region15: #{tpu_custom_call.1} parent=1 // pred_check_branch
      %33 = sbr.rel (0) target = $region17
    $region16: #{tpu_custom_call.1} parent=1 // pred_region
      _
    $region17: #{tpu_custom_call.1} parent=1 // pred_fallthru
      _
    // Predicated region
    $region18: #{tpu_custom_call.1} parent=1 // pred_check
      _
    $region19: #{tpu_custom_call.1} parent=1 // pred_check_branch
      %35 = sbr.rel (0) target = $region21
    $region20: #{tpu_custom_call.1} parent=1 // pred_region
      _
    $region21: #{tpu_custom_call.1} parent=1 // pred_fallthru
      _
    // Predicated region
    $region22: #{tpu_custom_call.1} parent=1 // pred_check
      _
    $region23: #{tpu_custom_call.1} parent=1 // pred_check_branch
      %37 = sbr.rel (0) target = $region25
    $region24: #{tpu_custom_call.1} parent=1 // pred_region
      %s39 = ssub.s32 6144, 6144
      %40 = vsyncadd [#allocation8], %s39
      %s41 = sshll.u32 [#allocation7], 4
      %s42 = int_to_ptr.vmem [resolvable:$true] %s41
      %47 = dma.hbm_to_vmem [thread:$0]  %s5, 6144, %s42, [#allocation8], 128, 128, 8
    $region25: #{tpu_custom_call.1} parent=1 // pred_fallthru
      _
    // Predicated region
    $region26: #{tpu_custom_call.1} parent=1 // pred_check
      _
    $region27: #{tpu_custom_call.1} parent=1 // pred_check_branch
      %49 = sbr.rel (0) target = $region29
    $region28: #{tpu_custom_call.1} parent=1 // pred_region
      _
    $region29: #{tpu_custom_call.1} parent=1 // pred_fallthru
      _
    // Predicated region
    $region30: #{tpu_custom_call.1} parent=1 // pred_check
      _
    $region31: #{tpu_custom_call.1} parent=1 // pred_check_branch
      %51 = sbr.rel (0) target = $region33
    $region32: #{tpu_custom_call.1} parent=1 // pred_region
      _
    $region33: #{tpu_custom_call.1} parent=1 // pred_fallthru
      _
    // Predicated region
    $region34: #{tpu_custom_call.1} parent=1 // pred_check
      _
    $region35: #{tpu_custom_call.1} parent=1 // pred_check_branch
      %53 = sbr.rel (0) target = $region37
    $region36: #{tpu_custom_call.1} parent=1 // pred_region
      %54 = dma.done [#allocation5], 3072
    $region37: #{tpu_custom_call.1} parent=1 // pred_fallthru
      _
    // Predicated region
    $region38: #{tpu_custom_call.1} parent=1 // pred_check
      _
    $region39: #{tpu_custom_call.1} parent=1 // pred_check_branch
      %56 = sbr.rel (0) target = $region41
    $region40: #{tpu_custom_call.1} parent=1 // pred_region
      %57 = dma.done [#allocation8], 6144
    $region41: #{tpu_custom_call.1} parent=1 // pred_fallthru
      _
    %vm58 = vcmask 523264
    %59 = vst.msk [vmem:[#allocation2] sm:$0xff] %vm58, 0.0
    %60 = vst.msk [vmem:[#allocation2 + $0x18] sm:$0xff] %vm58, 0.0
    %61 = vst.msk [vmem:[#allocation2 + $0x30] sm:$0xff] %vm58, 0.0
    %62 = vst [vmem:[#allocation3] sm:$0xff] 0.0
    %63 = vst [vmem:[#allocation3 + $0x30] sm:$0xff] 0.0
    %v64 = vld [vmem:[%s0] sm:$0xff]
    %v65 = vld [vmem:[%s0 + $0x8] sm:$0xff]
    %66 = vst.msk [vmem:[#allocation2 + $0x8] sm:$0xff] %vm58, %v64
    %67 = vst.msk [vmem:[#allocation2 + $0x10] sm:$0xff] %vm58, %v65
    %s68 = scalar_lea.vmem %s0, 16
    %v69 = vld [vmem:[%s68] sm:$0xff]
    %v70 = vld [vmem:[%s68 + $0x8] sm:$0xff]
    %71 = vst.msk [vmem:[#allocation2 + $0x20] sm:$0xff] %vm58, %v69
    %72 = vst.msk [vmem:[#allocation2 + $0x28] sm:$0xff] %vm58, %v70
    %v73 = vld [vmem:[#allocation2 + $0x6] sm:$0xff]
    %v74 = vld [vmem:[#allocation2 + $0xe] sm:$0xff]
    %v75 = vld [vmem:[#allocation2 + $0x16] sm:$0xff]
    %v76 = vld [vmem:[#allocation2 + $0x1e] sm:$0xff]
    %v77 = vld [vmem:[#allocation2 + $0x26] sm:$0xff]
    %v78 = vld [vmem:[#allocation2 + $0x8] sm:$0xff]
    %v79 = vld [vmem:[#allocation2 + $0x10] sm:$0xff]
    %v80 = vld [vmem:[#allocation2 + $0x18] sm:$0xff]
    %v81 = vld [vmem:[#allocation2 + $0x20] sm:$0xff]
    %v82 = vld [vmem:[#allocation2 + $0x28] sm:$0xff]
    %v83 = vld [vmem:[#allocation2 + $0xa] sm:$0xff]
    %v84 = vld [vmem:[#allocation2 + $0x12] sm:$0xff]
    %v85 = vld [vmem:[#allocation2 + $0x1a] sm:$0xff]
    %v86 = vld [vmem:[#allocation2 + $0x22] sm:$0xff]
    %v87 = vld [vmem:[#allocation2 + $0x2a] sm:$0xff]
    %93 = vrot.lane.b32.xlu0 %v78, 64
    %v94 = vpop.permute.xlu0 %93
    %95 = vrot.lane.b32.xlu0 %v79, 64
    %v96 = vpop.permute.xlu0 %95
    %97 = vrot.lane.b32.xlu0 %v80, 64
    %v98 = vpop.permute.xlu0 %97
    %99 = vrot.lane.b32.xlu0 %v81, 64
    %v100 = vpop.permute.xlu0 %99
    %101 = vrot.lane.b32.xlu0 %v82, 64
    %v102 = vpop.permute.xlu0 %101
    %v108 = vsel %vm58, %v73, %v94
    %v109 = vsel %vm58, %v74, %v96
    %v110 = vsel %vm58, %v75, %v98
    %v111 = vsel %vm58, %v76, %v100
    %v112 = vsel %vm58, %v77, %v102
    %v113 = vld [vmem:[#allocation4] sm:$0xff]
    %v114 = vld [vmem:[#allocation4 + $0x8] sm:$0xff]
    %v115 = vld [vmem:[#allocation4 + $0x10] sm:$0xff]
    %v116 = vld [vmem:[#allocation4 + $0x18] sm:$0xff]
    %v117 = vld [vmem:[#allocation4 + $0x20] sm:$0xff]
    %v118 = vld [vmem:[#allocation4 + $0x28] sm:$0xff]
    %v119 = vld [vmem:[#allocation4 + $0x30] sm:$0xff]
    %v120 = vld [vmem:[#allocation4 + $0x38] sm:$0xff]
    %v121 = vld [vmem:[#allocation4 + $0x40] sm:$0xff]
    %v122 = vld [vmem:[#allocation4 + $0x48] sm:$0xff]
    %v123 = vld [vmem:[#allocation4 + $0x50] sm:$0xff]
    %v124 = vld [vmem:[#allocation4 + $0x58] sm:$0xff]
    %v125 = vld [vmem:[#allocation4 + $0x60] sm:$0xff]
    %v126 = vld [vmem:[#allocation4 + $0x68] sm:$0xff]
    %v127 = vld [vmem:[#allocation4 + $0x70] sm:$0xff]
    %v128 = vld [vmem:[#allocation4 + $0x78] sm:$0xff]
    %v129 = vld [vmem:[#allocation4 + $0x80] sm:$0xff]
    %v130 = vld [vmem:[#allocation4 + $0x88] sm:$0xff]
    %v131 = vld [vmem:[#allocation4 + $0x90] sm:$0xff]
    %v132 = vld [vmem:[#allocation4 + $0x98] sm:$0xff]
    %v133 = vld [vmem:[#allocation4 + $0xa0] sm:$0xff]
    %v134 = vld [vmem:[#allocation4 + $0xa8] sm:$0xff]
    %v135 = vld [vmem:[#allocation4 + $0xb0] sm:$0xff]
    %v136 = vld [vmem:[#allocation4 + $0xb8] sm:$0xff]
    %v138 = vsel %vm58, %v83, 0
    %v141 = vsel %vm58, %v84, 0
    %v144 = vsel %vm58, %v85, 0
    %v147 = vsel %vm58, %v86, 0
    %v150 = vsel %vm58, %v87, 0
    %152 = vmatprep.subr.mxu0 0.0
    %153 = vmatpush1.msra.mxu0 %v113
    %154 = vmatprep.subr.mxu0 0.0
    %155 = vmatpush1.msra.mxu0 %v114
    %156 = vmatprep.subr.mxu0 0.0
    %157 = vmatpush1.msra.mxu0 %v115
    %158 = vmatprep.subr.mxu0 0.0
    %159 = vmatpush1.msra.mxu0 %v116
    %160 = vmatprep.subr.mxu0 0.0
    %161 = vmatpush1.msra.mxu0 %v117
    %162 = vmatprep.subr.mxu0 0.0
    %163 = vmatpush1.msra.mxu0 %v118
    %164 = vmatprep.subr.mxu0 0.0
    %165 = vmatpush1.msra.mxu0 %v119
    %166 = vmatprep.subr.mxu0 0.0
    %167 = vmatpush1.msra.mxu0 %v120
    %168 = vmatprep.subr.mxu0 0.0
    %169 = vmatpush1.msra.mxu0 %v121
    %170 = vmatprep.subr.mxu0 0.0
    %171 = vmatpush1.msra.mxu0 %v122
    %172 = vmatprep.subr.mxu0 0.0
    %173 = vmatpush1.msra.mxu0 %v123
    %174 = vmatprep.subr.mxu0 0.0
    %175 = vmatpush1.msra.mxu0 %v124
    %176 = vmatprep.subr.mxu0 0.0
    %177 = vmatpush1.msra.mxu0 %v125
    %178 = vmatprep.subr.mxu0 0.0
    %179 = vmatpush1.msra.mxu0 %v126
    %180 = vmatprep.subr.mxu0 0.0
    %181 = vmatpush1.msra.mxu0 %v127
    %182 = vmatprep.subr.mxu0 0.0
    %183 = vmatpush1.msra.mxu0 %v128
    %184 = vmatprep.subr.mxu0 0.0
    %185 = vmatpush1.msra.mxu0 %v129
    %186 = vmatprep.subr.mxu0 0.0
    %187 = vmatpush1.msra.mxu0 %v130
    %188 = vmatprep.subr.mxu0 0.0
    %189 = vmatpush1.msra.mxu0 %v131
    %190 = vmatprep.subr.mxu0 0.0
    %191 = vmatpush1.msra.mxu0 %v132
    %192 = vmatprep.subr.mxu0 0.0
    %193 = vmatpush1.msra.mxu0 %v133
    %194 = vmatprep.subr.mxu0 0.0
    %195 = vmatpush1.msra.mxu0 %v134
    %196 = vmatprep.subr.mxu0 0.0
    %197 = vmatpush1.msra.mxu0 %v135
    %198 = vmatprep.subr.mxu0 0.0
    %199 = vmatpush1.msra.mxu0 %v136
    %200 = vmatprep.subr.mxu0 0.0
    %201 = vmatpush1.msra.mxu0 0.0
    %202 = vmatprep.subr.mxu0 0.0
    %203 = vmatpush1.msra.mxu0 0.0
    %204 = vmatprep.subr.mxu0 0.0
    %205 = vmatpush1.msra.mxu0 0.0
    %206 = vmatprep.subr.mxu0 0.0
    %207 = vmatpush1.msra.mxu0 0.0
    %208 = vmatprep.subr.mxu0 0.0
    %209 = vmatpush1.msra.mxu0 0.0
    %210 = vmatprep.subr.mxu0 0.0
    %211 = vmatpush1.msra.mxu0 0.0
    %212 = vmatprep.subr.mxu0 0.0
    %213 = vmatpush1.msra.mxu0 0.0
    %214 = vmatprep.subr.mxu0 0.0
    %215 = vmatpush1.msra.mxu0 0.0
    %216 = vmatprep.mubr.f32.mxu0 %v138
    %217 = vmatmul.mubr.f32.gmra.mrb[0].mxu0 %v108
    %v218 = vpop.f32.mrb[0].mxu0
    %v219 = vadd.f32 0.0, %v218
    %v220 = vpop.f32.mrb[0].mxu0
    %221 = vmatprep.mubr.f32.mxu0 %v141
    %222 = vmatmul.mubr.f32.gmra.mrb[0].mxu0 %v109
    %v223 = vpop.f32.mrb[0].mxu0
    %v224 = vadd.f32 0.0, %v223
    %v225 = vpop.f32.mrb[0].mxu0
    %226 = vmatprep.mubr.f32.mxu0 %v144
    %227 = vmatmul.mubr.f32.gmra.mrb[0].mxu0 %v110
    %v228 = vpop.f32.mrb[0].mxu0
    %v229 = vadd.f32 0.0, %v228
    %v230 = vpop.f32.mrb[0].mxu0
    %231 = vmatprep.mubr.f32.mxu0 %v147
    %232 = vmatmul.mubr.f32.gmra.mrb[0].mxu0 %v111
    %v233 = vpop.f32.mrb[0].mxu0
    %v234 = vadd.f32 0.0, %v233
    %v235 = vpop.f32.mrb[0].mxu0
    %236 = vmatprep.mubr.f32.mxu0 %v150
    %237 = vmatmul.mubr.f32.gmra.mrb[0].mxu0 %v112
    %v238 = vpop.f32.mrb[0].mxu0
    %v239 = vadd.f32 0.0, %v238
    %v240 = vpop.f32.mrb[0].mxu0
    %241 = vdwg.mxu0
    %v242 = vld [vmem:[%s3] sm:$0x1]
    %v244 = vlaneseq
    %v245 = vshrl.u32 %v244, 7
    %v246 = vsub.s32 0, %v245
    %v247 = vrot.slane %v242, %v246
    %v249 = vmul.f32 %v219, %v247
    %v250 = vmul.f32 %v224, %v247
    %v251 = vmul.f32 %v229, %v247
    %v252 = vmul.f32 %v234, %v247
    %v253 = vmul.f32 %v239, %v247
    %v254 = vld [vmem:[%s4] sm:$0x1]
    %v256 = vlaneseq
    %v257 = vshrl.u32 %v256, 7
    %v258 = vsub.s32 0, %v257
    %v259 = vrot.slane %v254, %v258
    %v261 = vadd.f32 %v249, %v259
    %v262 = vadd.f32 %v250, %v259
    %v263 = vadd.f32 %v251, %v259
    %v264 = vadd.f32 %v252, %v259
    %v265 = vadd.f32 %v253, %v259
    %v266 = vmax.f32 %v261, 0.0
    %v267 = vmax.f32 %v262, 0.0
    %v268 = vmax.f32 %v263, 0.0
    %v269 = vmax.f32 %v264, 0.0
    %v270 = vmax.f32 %v265, 0.0
    %v271 = vld [vmem:[%s1] sm:$0xff]
    %v272 = vld [vmem:[%s1 + $0x8] sm:$0xff]
    %v273 = vld [vmem:[%s1 + $0x10] sm:$0xff]
    %v274 = vld [vmem:[%s1 + $0x18] sm:$0xff]
    %v275 = vld [vmem:[%s1 + $0x20] sm:$0xff]
    %277 = vset.pattern.permute.xlu0 0
    %278 = vperm.xlu0 %277, %v271
    %v279 = vpop.permute.xlu0 %278
    %282 = vset.pattern.permute.xlu0 0
    %283 = vperm.xlu0 %282, %v272
    %v284 = vpop.permute.xlu0 %283
    %287 = vset.pattern.permute.xlu0 0
    %288 = vperm.xlu0 %287, %v273
    %v289 = vpop.permute.xlu0 %288
    %292 = vset.pattern.permute.xlu0 0
    %293 = vperm.xlu0 %292, %v274
    %v294 = vpop.permute.xlu0 %293
    %297 = vset.pattern.permute.xlu0 0
    %298 = vperm.xlu0 %297, %v275
    %v299 = vpop.permute.xlu0 %298
    %v301 = vmul.f32 %v266, %v279
    %v302 = vmul.f32 %v267, %v284
    %v303 = vmul.f32 %v268, %v289
    %v304 = vmul.f32 %v269, %v294
    %v305 = vmul.f32 %v270, %v299
    %306 = vst [vmem:[#allocation3 + $0x8] sm:$0xff] %v301
    %307 = vst [vmem:[#allocation3 + $0x10] sm:$0xff] %v302
    %308 = vst [vmem:[#allocation3 + $0x18] sm:$0xff] %v303
    %309 = vst [vmem:[#allocation3 + $0x20] sm:$0xff] %v304
    %310 = vst [vmem:[#allocation3 + $0x28] sm:$0xff] %v305
    %v311 = vld [vmem:[#allocation3 + $0x6] sm:$0xff]
    %v312 = vld [vmem:[#allocation3 + $0xe] sm:$0xff]
    %v313 = vld [vmem:[#allocation3 + $0x16] sm:$0xff]
    %v314 = vld [vmem:[#allocation3 + $0x1e] sm:$0xff]
    %v315 = vld [vmem:[#allocation3 + $0x26] sm:$0xff]
    %v316 = vld [vmem:[#allocation3 + $0x8] sm:$0xff]
    %v317 = vld [vmem:[#allocation3 + $0x10] sm:$0xff]
    %v318 = vld [vmem:[#allocation3 + $0x18] sm:$0xff]
    %v319 = vld [vmem:[#allocation3 + $0x20] sm:$0xff]
    %v320 = vld [vmem:[#allocation3 + $0x28] sm:$0xff]
    %v321 = vld [vmem:[#allocation3 + $0xa] sm:$0xff]
    %v322 = vld [vmem:[#allocation3 + $0x12] sm:$0xff]
    %v323 = vld [vmem:[#allocation3 + $0x1a] sm:$0xff]
    %v324 = vld [vmem:[#allocation3 + $0x22] sm:$0xff]
    %v325 = vld [vmem:[#allocation3 + $0x2a] sm:$0xff]
    %v326 = vld [vmem:[#allocation7] sm:$0xff]
    %v327 = vld [vmem:[#allocation7 + $0x8] sm:$0xff]
    %v328 = vld [vmem:[#allocation7 + $0x10] sm:$0xff]
    %v329 = vld [vmem:[#allocation7 + $0x18] sm:$0xff]
    %v330 = vld [vmem:[#allocation7 + $0x20] sm:$0xff]
    %v331 = vld [vmem:[#allocation7 + $0x28] sm:$0xff]
    %v332 = vld [vmem:[#allocation7 + $0x30] sm:$0xff]
    %v333 = vld [vmem:[#allocation7 + $0x38] sm:$0xff]
    %v334 = vld [vmem:[#allocation7 + $0x40] sm:$0xff]
    %v335 = vld [vmem:[#allocation7 + $0x48] sm:$0xff]
    %v336 = vld [vmem:[#allocation7 + $0x50] sm:$0xff]
    %v337 = vld [vmem:[#allocation7 + $0x58] sm:$0xff]
    %v338 = vld [vmem:[#allocation7 + $0x60] sm:$0xff]
    %v339 = vld [vmem:[#allocation7 + $0x68] sm:$0xff]
    %v340 = vld [vmem:[#allocation7 + $0x70] sm:$0xff]
    %v341 = vld [vmem:[#allocation7 + $0x78] sm:$0xff]
    %v342 = vld [vmem:[#allocation7 + $0x80] sm:$0xff]
    %v343 = vld [vmem:[#allocation7 + $0x88] sm:$0xff]
    %v344 = vld [vmem:[#allocation7 + $0x90] sm:$0xff]
    %v345 = vld [vmem:[#allocation7 + $0x98] sm:$0xff]
    %v346 = vld [vmem:[#allocation7 + $0xa0] sm:$0xff]
    %v347 = vld [vmem:[#allocation7 + $0xa8] sm:$0xff]
    %v348 = vld [vmem:[#allocation7 + $0xb0] sm:$0xff]
    %v349 = vld [vmem:[#allocation7 + $0xb8] sm:$0xff]
    %v350 = vld [vmem:[#allocation7 + $0xc0] sm:$0xff]
    %v351 = vld [vmem:[#allocation7 + $0xc8] sm:$0xff]
    %v352 = vld [vmem:[#allocation7 + $0xd0] sm:$0xff]
    %v353 = vld [vmem:[#allocation7 + $0xd8] sm:$0xff]
    %v354 = vld [vmem:[#allocation7 + $0xe0] sm:$0xff]
    %v355 = vld [vmem:[#allocation7 + $0xe8] sm:$0xff]
    %v356 = vld [vmem:[#allocation7 + $0xf0] sm:$0xff]
    %v357 = vld [vmem:[#allocation7 + $0xf8] sm:$0xff]
    %v358 = vld [vmem:[#allocation7 + $0x100] sm:$0xff]
    %v359 = vld [vmem:[#allocation7 + $0x108] sm:$0xff]
    %v360 = vld [vmem:[#allocation7 + $0x110] sm:$0xff]
    %v361 = vld [vmem:[#allocation7 + $0x118] sm:$0xff]
    %v362 = vld [vmem:[#allocation7 + $0x120] sm:$0xff]
    %v363 = vld [vmem:[#allocation7 + $0x128] sm:$0xff]
    %v364 = vld [vmem:[#allocation7 + $0x130] sm:$0xff]
    %v365 = vld [vmem:[#allocation7 + $0x138] sm:$0xff]
    %v366 = vld [vmem:[#allocation7 + $0x140] sm:$0xff]
    %v367 = vld [vmem:[#allocation7 + $0x148] sm:$0xff]
    %v368 = vld [vmem:[#allocation7 + $0x150] sm:$0xff]
    %v369 = vld [vmem:[#allocation7 + $0x158] sm:$0xff]
    %v370 = vld [vmem:[#allocation7 + $0x160] sm:$0xff]
    %v371 = vld [vmem:[#allocation7 + $0x168] sm:$0xff]
    %v372 = vld [vmem:[#allocation7 + $0x170] sm:$0xff]
    %v373 = vld [vmem:[#allocation7 + $0x178] sm:$0xff]
    %374 = vmatprep.subr.mxu0 0.0
    %375 = vmatpush1.msra.mxu0 %v326
    %376 = vmatprep.subr.mxu0 0.0
    %377 = vmatpush1.msra.mxu0 %v327
    %378 = vmatprep.subr.mxu0 0.0
    %379 = vmatpush1.msra.mxu0 %v328
    %380 = vmatprep.subr.mxu0 0.0
    %381 = vmatpush1.msra.mxu0 %v329
    %382 = vmatprep.subr.mxu0 0.0
    %383 = vmatpush1.msra.mxu0 %v330
    %384 = vmatprep.subr.mxu0 0.0
    %385 = vmatpush1.msra.mxu0 %v331
    %386 = vmatprep.subr.mxu0 0.0
    %387 = vmatpush1.msra.mxu0 %v332
    %388 = vmatprep.subr.mxu0 0.0
    %389 = vmatpush1.msra.mxu0 %v333
    %390 = vmatprep.subr.mxu0 0.0
    %391 = vmatpush1.msra.mxu0 %v334
    %392 = vmatprep.subr.mxu0 0.0
    %393 = vmatpush1.msra.mxu0 %v335
    %394 = vmatprep.subr.mxu0 0.0
    %395 = vmatpush1.msra.mxu0 %v336
    %396 = vmatprep.subr.mxu0 0.0
    %397 = vmatpush1.msra.mxu0 %v337
    %398 = vmatprep.subr.mxu0 0.0
    %399 = vmatpush1.msra.mxu0 %v338
    %400 = vmatprep.subr.mxu0 0.0
    %401 = vmatpush1.msra.mxu0 %v339
    %402 = vmatprep.subr.mxu0 0.0
    %403 = vmatpush1.msra.mxu0 %v340
    %404 = vmatprep.subr.mxu0 0.0
    %405 = vmatpush1.msra.mxu0 %v341
    %406 = vmatprep.subr.mxu0 0.0
    %407 = vmatpush1.msra.mxu0 %v342
    %408 = vmatprep.subr.mxu0 0.0
    %409 = vmatpush1.msra.mxu0 %v343
    %410 = vmatprep.subr.mxu0 0.0
    %411 = vmatpush1.msra.mxu0 %v344
    %412 = vmatprep.subr.mxu0 0.0
    %413 = vmatpush1.msra.mxu0 %v345
    %414 = vmatprep.subr.mxu0 0.0
    %415 = vmatpush1.msra.mxu0 %v346
    %416 = vmatprep.subr.mxu0 0.0
    %417 = vmatpush1.msra.mxu0 %v347
    %418 = vmatprep.subr.mxu0 0.0
    %419 = vmatpush1.msra.mxu0 %v348
    %420 = vmatprep.subr.mxu0 0.0
    %421 = vmatpush1.msra.mxu0 %v349
    %422 = vmatprep.subr.mxu0 0.0
    %423 = vmatpush1.msra.mxu0 %v350
    %424 = vmatprep.subr.mxu0 0.0
    %425 = vmatpush1.msra.mxu0 %v351
    %426 = vmatprep.subr.mxu0 0.0
    %427 = vmatpush1.msra.mxu0 %v352
    %428 = vmatprep.subr.mxu0 0.0
    %429 = vmatpush1.msra.mxu0 %v353
    %430 = vmatprep.subr.mxu0 0.0
    %431 = vmatpush1.msra.mxu0 %v354
    %432 = vmatprep.subr.mxu0 0.0
    %433 = vmatpush1.msra.mxu0 %v355
    %434 = vmatprep.subr.mxu0 0.0
    %435 = vmatpush1.msra.mxu0 %v356
    %436 = vmatprep.subr.mxu0 0.0
    %437 = vmatpush1.msra.mxu0 %v357
    %438 = vmatprep.mubr.f32.mxu0 %v316
    %439 = vmatmul.mubr.f32.gmra.mrb[0].mxu0 %v311
    %v440 = vpop.f32.mrb[0].mxu0
    %v441 = vadd.f32 0.0, %v440
    %v442 = vpop.f32.mrb[0].mxu0
    %443 = vmatprep.mubr.f32.mxu0 %v317
    %444 = vmatmul.mubr.f32.gmra.mrb[0].mxu0 %v312
    %v445 = vpop.f32.mrb[0].mxu0
    %v446 = vadd.f32 0.0, %v445
    %v447 = vpop.f32.mrb[0].mxu0
    %448 = vmatprep.mubr.f32.mxu0 %v318
    %449 = vmatmul.mubr.f32.gmra.mrb[0].mxu0 %v313
    %v450 = vpop.f32.mrb[0].mxu0
    %v451 = vpop.f32.mrb[0].mxu0
    %452 = vmatprep.mubr.f32.mxu0 %v319
    %453 = vmatmul.mubr.f32.gmra.mrb[0].mxu0 %v314
    %v454 = vpop.f32.mrb[0].mxu0
    %v455 = vadd.f32 0.0, %v454
    %v456 = vpop.f32.mrb[0].mxu0
    %457 = vmatprep.mubr.f32.mxu0 %v320
    %458 = vmatmul.mubr.f32.gmra.mrb[0].mxu0 %v315
    %v459 = vpop.f32.mrb[0].mxu0
    %v460 = vadd.f32 0.0, %v459
    %v461 = vpop.f32.mrb[0].mxu0
    %462 = vdwg.mxu0
    %463 = vmatprep.subr.mxu0 0.0
    %464 = vmatpush1.msra.mxu0 %v358
    %465 = vmatprep.subr.mxu0 0.0
    %466 = vmatpush1.msra.mxu0 %v359
    %467 = vmatprep.subr.mxu0 0.0
    %468 = vmatpush1.msra.mxu0 %v360
    %469 = vmatprep.subr.mxu0 0.0
    %470 = vmatpush1.msra.mxu0 %v361
    %471 = vmatprep.subr.mxu0 0.0
    %472 = vmatpush1.msra.mxu0 %v362
    %473 = vmatprep.subr.mxu0 0.0
    %474 = vmatpush1.msra.mxu0 %v363
    %475 = vmatprep.subr.mxu0 0.0
    %476 = vmatpush1.msra.mxu0 %v364
    %477 = vmatprep.subr.mxu0 0.0
    %478 = vmatpush1.msra.mxu0 %v365
    %479 = vmatprep.subr.mxu0 0.0
    %480 = vmatpush1.msra.mxu0 %v366
    %481 = vmatprep.subr.mxu0 0.0
    %482 = vmatpush1.msra.mxu0 %v367
    %483 = vmatprep.subr.mxu0 0.0
    %484 = vmatpush1.msra.mxu0 %v368
    %485 = vmatprep.subr.mxu0 0.0
    %486 = vmatpush1.msra.mxu0 %v369
    %487 = vmatprep.subr.mxu0 0.0
    %488 = vmatpush1.msra.mxu0 %v370
    %489 = vmatprep.subr.mxu0 0.0
    %490 = vmatpush1.msra.mxu0 %v371
    %491 = vmatprep.subr.mxu0 0.0
    %492 = vmatpush1.msra.mxu0 %v372
    %493 = vmatprep.subr.mxu0 0.0
    %494 = vmatpush1.msra.mxu0 %v373
    %495 = vmatprep.subr.mxu0 0.0
    %496 = vmatpush1.msra.mxu0 0.0
    %497 = vmatprep.subr.mxu0 0.0
    %498 = vmatpush1.msra.mxu0 0.0
    %499 = vmatprep.subr.mxu0 0.0
    %500 = vmatpush1.msra.mxu0 0.0
    %501 = vmatprep.subr.mxu0 0.0
    %502 = vmatpush1.msra.mxu0 0.0
    %503 = vmatprep.subr.mxu0 0.0
    %504 = vmatpush1.msra.mxu0 0.0
    %505 = vmatprep.subr.mxu0 0.0
    %506 = vmatpush1.msra.mxu0 0.0
    %507 = vmatprep.subr.mxu0 0.0
    %508 = vmatpush1.msra.mxu0 0.0
    %509 = vmatprep.subr.mxu0 0.0
    %510 = vmatpush1.msra.mxu0 0.0
    %511 = vmatprep.subr.mxu0 0.0
    %512 = vmatpush1.msra.mxu0 0.0
    %513 = vmatprep.subr.mxu0 0.0
    %514 = vmatpush1.msra.mxu0 0.0
    %515 = vmatprep.subr.mxu0 0.0
    %516 = vmatpush1.msra.mxu0 0.0
    %517 = vmatprep.subr.mxu0 0.0
    %518 = vmatpush1.msra.mxu0 0.0
    %519 = vmatprep.subr.mxu0 0.0
    %520 = vmatpush1.msra.mxu0 0.0
    %521 = vmatprep.subr.mxu0 0.0
    %522 = vmatpush1.msra.mxu0 0.0
    %523 = vmatprep.subr.mxu0 0.0
    %524 = vmatpush1.msra.mxu0 0.0
    %525 = vmatprep.subr.mxu0 0.0
    %526 = vmatpush1.msra.mxu0 0.0
    %527 = vmatprep.mubr.f32.mxu0 0.0
    %528 = vmatmul.mubr.f32.gmra.mrb[0].mxu0 %v321
    %v529 = vpop.f32.mrb[0].mxu0
    %v530 = vadd.f32 %v441, %v529
    %v531 = vpop.f32.mrb[0].mxu0
    %532 = vmatprep.mubr.f32.mxu0 0.0
    %533 = vmatmul.mubr.f32.gmra.mrb[0].mxu0 %v322
    %v534 = vpop.f32.mrb[0].mxu0
    %v535 = vadd.f32 %v446, %v534
    %v536 = vpop.f32.mrb[0].mxu0
    %537 = vmatprep.mubr.f32.mxu0 0.0
    %538 = vmatmul.mubr.f32.gmra.mrb[0].mxu0 %v323
    %v539 = vpop.f32.mrb[0].mxu0
    %v540 = vpop.f32.mrb[0].mxu0
    %541 = vmatprep.mubr.f32.mxu0 0.0
    %542 = vmatmul.mubr.f32.gmra.mrb[0].mxu0 %v324
    %v543 = vpop.f32.mrb[0].mxu0
    %v544 = vadd.f32 %v455, %v543
    %v545 = vpop.f32.mrb[0].mxu0
    %546 = vmatprep.mubr.f32.mxu0 0.0
    %547 = vmatmul.mubr.f32.gmra.mrb[0].mxu0 %v325
    %v548 = vpop.f32.mrb[0].mxu0
    %v549 = vadd.f32 %v460, %v548
    %v550 = vpop.f32.mrb[0].mxu0
    %551 = vdwg.mxu0
    %v552 = vld [vmem:[%s6] sm:$0x1]
    %v554 = vlaneseq
    %v555 = vshrl.u32 %v554, 7
    %v556 = vsub.s32 0, %v555
    %v557 = vrot.slane %v552, %v556
    %v559 = vmul.f32 %v530, %v557
    %v560 = vmul.f32 %v535, %v557
    %v561 = vmul.f32 %v544, %v557
    %v562 = vmul.f32 %v549, %v557
    %v563 = vld [vmem:[%s7] sm:$0x1]
    %v565 = vlaneseq
    %v566 = vshrl.u32 %v565, 7
    %v567 = vsub.s32 0, %v566
    %v568 = vrot.slane %v563, %v567
    %v570 = vadd.f32 %v559, %v568
    %v571 = vadd.f32 %v560, %v568
    %v572 = vadd.f32 %v561, %v568
    %v573 = vadd.f32 %v562, %v568
    %v574 = vmax.f32 %v570, 0.0
    %v575 = vmax.f32 %v571, 0.0
    %v576 = vmax.f32 %v572, 0.0
    %v577 = vmax.f32 %v573, 0.0
    %578 = vst [vmem:[#allocation9] sm:$0xff] %v574
    %579 = vst [vmem:[#allocation9 + $0x8] sm:$0xff] %v575
    %s580 = scalar_lea.vmem [#allocation9], 16
    %581 = vst [vmem:[%s580] sm:$0xff] %v576
    %582 = vst [vmem:[%s580 + $0x8] sm:$0xff] %v577
    // Predicated region
    $region42: #{tpu_custom_call.1} parent=1 // pred_check
      _
    $region43: #{tpu_custom_call.1} parent=1 // pred_check_branch
      %584 = sbr.rel (0) target = $region45
    $region44: #{tpu_custom_call.1} parent=1 // pred_region
      %s586 = ssub.s32 512, 512
      %587 = vsyncadd [#allocation6], %s586
      %s588 = sshll.u32 [#allocation9], 4
      %s589 = int_to_ptr.vmem [resolvable:$true] %s588
      %594 = dma.vmem_to_hbm [thread:$0]  %s589, 512, %s8, [#allocation6], 128, 128, 8
    $region45: #{tpu_custom_call.1} parent=1 // pred_fallthru
      _
    // Predicated region
    $region46: #{tpu_custom_call.1} parent=1 // pred_check
      _
    $region47: #{tpu_custom_call.1} parent=1 // pred_check_branch
      %596 = sbr.rel (0) target = $region49
    $region48: #{tpu_custom_call.1} parent=1 // pred_region
      %597 = dma.done [#allocation6], 512
    $region49: #{tpu_custom_call.1} parent=1 // pred_fallthru
      _
    %598 = vsyncpa [#allocation5], 1
    %599 = vsyncpa [#allocation8], 1
    %600 = vsyncpa [#allocation6], 1

</llo_original>
